<compile_context>
chip_gen: v6e
topology: v6e:2x2x1
jax: 0.10.0
libtpu: 0.0.40
codegen_flags: <defaults>
</compile_context>

<pallas_src>
import jax
import jax.numpy as jnp
from jax.experimental import pallas as pl
from jax.experimental.pallas import tpu as pltpu


def _make_adapter_kernel(b_blk):
    def adapter_kernel(x_ref, w1_ref, w2_ref, o_ref):
        # x_ref : (b_blk, Cin, tile_hw)  channels on sublanes, spatial on lanes
        # w1_ref: (Cmid, Cin)            resident in VMEM
        # w2_ref: (Cin, Cmid)            resident in VMEM
        # o_ref : (b_blk, Cin, tile_hw)  lane-dense output tile
        w1 = w1_ref[...]
        w2 = w2_ref[...]
        # Static, small unroll over the images in this block (2-D MXU matmuls,
        # no batch-dim relayout).
        for b in range(b_blk):
            x = x_ref[b]                                        # (Cin, tile_hw)
            h = jnp.dot(w1, x, preferred_element_type=jnp.float32)
            h = jnp.maximum(h, 0.0)                             # ReLU
            y = jnp.dot(w2, h.astype(w2.dtype),
                        preferred_element_type=jnp.float32)
            o_ref[b] = y.astype(o_ref.dtype)
    return adapter_kernel


def adapter_forward(x_nchw, w1, w2):
    """Fused Adapter forward.

    x_nchw: (N, Cin, H, W); w1: (Cmid, Cin, 1, 1); w2: (Cin, Cmid, 1, 1).
    Returns (N, Cin, H, W) — same layout/semantics as the PyTorch module.
    """
    if isinstance(x_nchw, (list, tuple)):        # PyTorch forward accepts a list
        x_nchw = x_nchw[0]

    N, Cin, H, W = x_nchw.shape
    Cmid = w1.shape[0]
    HW = H * W
    itemsize = jnp.dtype(x_nchw.dtype).itemsize

    # ---------------- generation-aware VMEM budget ----------------
    try:
        vmem_cap = int(pltpu.get_tpu_info().vmem_capacity_bytes)
    except Exception:
        vmem_cap = 64 * 1024 * 1024              # conservative fallback
    if vmem_cap <= 64 * 1024 * 1024:
        scoped_cap = 48 * 1024 * 1024            # v7x: leave headroom below 64 MiB
    else:
        scoped_cap = 96 * 1024 * 1024            # v5e / v6e: 128 MiB physical
    # Per-block byte budget: in + out double-buffered (4x) plus f32
    # intermediates (~1.25x) plus weights/margin  ->  ~cap / 8.
    block_budget = scoped_cap // 8

    # ---------------- tile / batch-block selection ----------------
    col_bytes = Cin * itemsize                   # one spatial column, all channels
    img_bytes = col_bytes * HW
    if img_bytes <= block_budget:
        # Whole-image spatial tile (one contiguous HBM slab per image); batch
        # several images per grid step to amortize per-step overhead.
        tile_hw = HW
        step_target = min(block_budget, 4 * 1024 * 1024)
        b_blk = max(1, step_target // img_bytes)
        b_blk = min(b_blk, 8)                    # keep the kernel unroll small
        if N > 1:                                # keep >= 2 grid steps (megacore)
            b_blk = min(b_blk, pl.cdiv(N, 2))
        b_blk = min(b_blk, N)
    else:
        # Large images: one image per step, lane-dense spatial tile sized from
        # the VMEM budget (multiple of 128 -> unmasked vector stores).
        b_blk = 1
        tile_hw = (block_budget // col_bytes) // 128 * 128
        tile_hw = max(128, min(tile_hw, pl.cdiv(HW, 128) * 128))

    grid = (pl.cdiv(N, b_blk), pl.cdiv(HW, tile_hw))

    # NCHW kept: flatten spatial dims only (free reshape, no transpose, no pad).
    x3d = x_nchw.reshape(N, Cin, HW)
    # 1x1 conv weights (Cout, Cin, 1, 1) -> matmul layout (tiny, VMEM-resident).
    w1m = w1.reshape(Cmid, Cin)                  # (Cmid, Cin)
    w2m = w2.reshape(Cin, Cmid)                  # (Cin, Cmid)

    out3d = pl.pallas_call(
        _make_adapter_kernel(b_blk),
        out_shape=jax.ShapeDtypeStruct((N, Cin, HW), x_nchw.dtype),
        grid_spec=pltpu.PrefetchScalarGridSpec(
            num_scalar_prefetch=0,
            grid=grid,
            in_specs=[
                pl.BlockSpec((b_blk, Cin, tile_hw), lambda n, p: (n, 0, p)),
                pl.BlockSpec((Cmid, Cin), lambda n, p: (0, 0)),   # w1 (resident)
                pl.BlockSpec((Cin, Cmid), lambda n, p: (0, 0)),   # w2 (resident)
            ],
            out_specs=pl.BlockSpec((b_blk, Cin, tile_hw), lambda n, p: (n, 0, p)),
        ),
        compiler_params=pltpu.CompilerParams(
            dimension_semantics=("parallel", "parallel"),
            vmem_limit_bytes=scoped_cap,         # explicit: v5e default is ~16 MiB
        ),
    )(x3d, w1m, w2m)

    return out3d.reshape(N, Cin, H, W)


if __name__ == "__main__":
    # Small shapes consistent with the module: in_feature=32 (reduction=4 -> mid=8).
    in_feature = 32
    reduction = 4
    mid = in_feature // reduction
    N, H, W = 2, 16, 16

    key = jax.random.PRNGKey(0)
    kx, k1, k2 = jax.random.split(key, 3)

    x = jax.random.normal(kx, (N, in_feature, H, W), dtype=jnp.float32)
    # Weight shapes match nn.Conv2d(..., kernel_size=1, bias=False).
    w1 = jax.random.normal(k1, (mid, in_feature, 1, 1), dtype=jnp.float32) * 0.05
    w2 = jax.random.normal(k2, (in_feature, mid, 1, 1), dtype=jnp.float32) * 0.05

    out = adapter_forward(x, w1, w2)
    out = jax.block_until_ready(out)

    # Plain-JAX reference of the same math (per-pixel W2 @ relu(W1 @ x)).
    x3 = x.reshape(N, in_feature, H * W)
    h_ref = jnp.maximum(jnp.einsum('oc,ncp->nop', w1.reshape(mid, in_feature), x3), 0.0)
    ref = jnp.einsum('co,nop->ncp', w2.reshape(in_feature, mid), h_ref)
    ref = ref.reshape(N, in_feature, H, W)

    assert out.shape == (N, in_feature, H, W)
    assert jnp.allclose(out, ref, atol=1e-3, rtol=1e-3)

    print("KERNEL_OK")
</pallas_src>

<mosaic_0001>
module attributes {stable_mosaic.version = 11 : i64} {
  func.func @adapter_kernel(%arg0: i32, %arg1: i32, %arg2: memref<1x32x256xf32, #tpu.memory_space<vmem>>, %arg3: memref<8x32xf32, #tpu.memory_space<vmem>>, %arg4: memref<32x8xf32, #tpu.memory_space<vmem>>, %arg5: memref<1x32x256xf32, #tpu.memory_space<vmem>>) attributes {dimension_semantics = [#tpu.dimension_semantics<parallel>, #tpu.dimension_semantics<parallel>], iteration_bounds = array<i64: 2, 1>, scalar_prefetch = 0 : i64, scratch_operands = 0 : i64, tpu.core_type = #tpu.core_type<tc>, window_params = [{transform_indices = @transform_0, window_bounds = array<i64: 1, 32, 256>}, {pipeline_mode = #tpu.pipeline_mode<synchronous>, transform_indices = @transform_1, window_bounds = array<i64: 8, 32>}, {pipeline_mode = #tpu.pipeline_mode<synchronous>, transform_indices = @transform_2, window_bounds = array<i64: 32, 8>}, {transform_indices = @transform_3, window_bounds = array<i64: 1, 32, 256>}]} {
    %c0 = arith.constant 0 : index
    %c0_0 = arith.constant 0 : index
    %0 = vector.load %arg3[%c0, %c0_0] : memref<8x32xf32, #tpu.memory_space<vmem>>, vector<8x32xf32>
    %c0_1 = arith.constant 0 : index
    %c0_2 = arith.constant 0 : index
    %1 = vector.load %arg4[%c0_1, %c0_2] : memref<32x8xf32, #tpu.memory_space<vmem>>, vector<32x8xf32>
    %c0_3 = arith.constant 0 : index
    %c0_4 = arith.constant 0 : index
    %c0_5 = arith.constant 0 : index
    %2 = vector.load %arg2[%c0_3, %c0_4, %c0_5] : memref<1x32x256xf32, #tpu.memory_space<vmem>>, vector<1x32x256xf32>
    %3 = vector.shape_cast %2 : vector<1x32x256xf32> to vector<32x256xf32>
    %cst = arith.constant dense<0.000000e+00> : vector<8x256xf32>
    %4 = tpu.matmul %0, %3, %cst {dimension_numbers = #tpu.dot_dimension_numbers<[1], [0], [0], [1], [0, 0, 1, 1], [], []>} : vector<8x32xf32>, vector<32x256xf32>, vector<8x256xf32> -> vector<8x256xf32>
    %cst_6 = arith.constant 0.000000e+00 : f32
    %5 = vector.broadcast %cst_6 : f32 to vector<8x256xf32>
    %6 = arith.maximumf %4, %5 : vector<8x256xf32>
    %cst_7 = arith.constant dense<0.000000e+00> : vector<32x256xf32>
    %7 = tpu.matmul %1, %6, %cst_7 {dimension_numbers = #tpu.dot_dimension_numbers<[1], [0], [0], [1], [0, 0, 1, 1], [], []>} : vector<32x8xf32>, vector<8x256xf32>, vector<32x256xf32> -> vector<32x256xf32>
    %c0_8 = arith.constant 0 : index
    %c0_9 = arith.constant 0 : index
    %c0_10 = arith.constant 0 : index
    %8 = vector.load %arg5[%c0_8, %c0_9, %c0_10] : memref<1x32x256xf32, #tpu.memory_space<vmem>>, vector<1x32x256xf32>
    %9 = vector.shape_cast %8 : vector<1x32x256xf32> to vector<32x256xf32>
    %10 = vector.shape_cast %7 : vector<32x256xf32> to vector<1x32x256xf32>
    tpu.vector_store %arg5[%c0_8, %c0_9, %c0_10], %10 {strides = array<i32>} : memref<1x32x256xf32, #tpu.memory_space<vmem>>, vector<1x32x256xf32>,
    return
  }
  func.func @transform_0(%arg0: i32, %arg1: i32) -> (i32, i32, i32) {
    %c0_i32 = arith.constant 0 : i32
    %c0_i32_0 = arith.constant 0 : i32
    return %arg0, %c0_i32, %arg1 : i32, i32, i32
  }
  func.func @transform_1(%arg0: i32, %arg1: i32) -> (i32, i32) {
    %c0_i32 = arith.constant 0 : i32
    %c0_i32_0 = arith.constant 0 : i32
    %c0_i32_1 = arith.constant 0 : i32
    return %c0_i32, %c0_i32_0 : i32, i32
  }
  func.func @transform_2(%arg0: i32, %arg1: i32) -> (i32, i32) {
    %c0_i32 = arith.constant 0 : i32
    %c0_i32_0 = arith.constant 0 : i32
    %c0_i32_1 = arith.constant 0 : i32
    return %c0_i32, %c0_i32_0 : i32, i32
  }
  func.func @transform_3(%arg0: i32, %arg1: i32) -> (i32, i32, i32) {
    %c0_i32 = arith.constant 0 : i32
    %c0_i32_0 = arith.constant 0 : i32
    return %arg0, %c0_i32, %arg1 : i32, i32, i32
  }
}

</mosaic_0001>

<llo_original>
// kernel: tpu_custom_call.1
$region0: #{tpu_custom_call.1}
  #allocation0 [shape = 'u32[]', space=smem, size = 0x4, offset = 0x4, fixed_abs, tag = 'smem constant byte address 0x4 - core index']
  #allocation1 [shape = 'u32[144,128]{1,0:T(1,128)}', space=vmem, size = 0x12000, scoped, tag = 'internal scratch']
  %s0 = inlined_call_operand.hbm [shape: f32[2,32,256], index: 0, kind: input, shape index: {}]
  %s1 = inlined_call_operand.vmem [shape: f32[8,32], index: 1, kind: input, shape index: {}]
  %s2 = inlined_call_operand.vmem [shape: f32[32,8], index: 2, kind: input, shape index: {}]
  %s3 = inlined_call_operand.hbm [shape: f32[2,32,256], index: 3, kind: output, shape index: {}]
  %s4 = sld [smem:[#allocation0]]
  $region49: #{tpu_custom_call.1} parent=0
    _
  %s6 = ssub.s32 1, %s4
  %s7 = scalar_select 0, %s6, %s4
  $region1: #{tpu_custom_call.1} parent=0
    #allocation2 [shape = 'u8[65536]{0}', space=vmem, size = 0x10000, scoped, tag = 'input window, operand 0']
    #allocation3 [shape = 's32[2]{0}', space=sflag, size = 0x8, scoped, tag = 'scoped memory for tpu_custom_call.1']
    #allocation4 [shape = 's32[2]{0}', space=sflag, size = 0x8, scoped, tag = 'scoped memory for tpu_custom_call.1']
    #allocation5 [shape = 'u8[65536]{0}', space=vmem, size = 0x10000, scoped, tag = 'output window, operand 0']
    %8 = vsyncpa [#allocation3], 0
    %s9 = scalar_lea.sflag [#allocation3], 1
    %10 = vsyncpa %s9, 0
    %11 = vsyncpa [#allocation4], 0
    %s12 = scalar_lea.sflag [#allocation4], 1
    %13 = vsyncpa %s12, 0
    loop: start=0, step=1, limit=4
    $region2: #{tpu_custom_call.1} parent=1 // loop_pre_header
      _
    $region3: #{tpu_custom_call.1} parent=1 // loop_header
      %s15 = sphi 0, %s19
      %p16 = scmp.ge.s32.totalorder %s15, 4
      %s22 = sphi 0, %s34
      %s23 = sphi 0, %s30
      %s24 = sphi 0, %s22
      %s25 = sphi 0, %s23
      %s26 = sphi 0, %s24
      %s27 = sphi 0, %s25
      %s39 = sphi 0, %s41
      %s42 = sphi 0, %s39
      %s43 = sphi 0, %s42
      %s59 = sphi 0, %s43
      %s63 = sphi 0, %s63
      %s65 = sphi 0, %s63
      %s66 = sphi 0, %s65
      %s80 = sphi 0, %s66
      %s84 = sphi 0, %s84
      %s86 = sphi 0, %s84
      %s87 = sphi 0, %s86
      %s101 = sphi 0, %s87
      %s109 = sphi 0, %s111
      %s112 = sphi 0, %s109
      %s113 = sphi 0, %s112
      %s129 = sphi 0, %s113
    $region4: #{tpu_custom_call.1} parent=1 // loop_header_branch
      %18 = sbr.rel (%p16) target = $region8
    $region5: #{tpu_custom_call.1} parent=1 // loop_body
      %s20 = ssub.s32 %s15, 1
      %s21 = ssub.s32 %s15, 2
      %s28 = sadd.s32 1, %s23
      %p29 = scmp.ge.s32.totalorder %s28, 1
      %s30 = scalar_select %p29, 0, %s28
      %s31 = sadd.s32 1, %s22
      %s32 = scalar_select %p29, %s31, %s22
      %p33 = scmp.ge.s32.totalorder %s32, 2
      %s34 = scalar_select %p33, 0, %s32
      %s35 = ssub.s32 %s22, %s34
      %s36 = ssub.s32 %s23, %s30
      %s37 = sor.u32 %s35, %s36
      %p38 = scmp.eq.s32.totalorder %s37, 0
      %s40 = sadd.s32 %s39, 1
      %s41 = scalar_select %p38, %s39, %s40
      %p44 = pneg %p38
      %p45 = scmp.eq.s32.totalorder %s15, 1
      %p46 = por %p44, %p45
      %p47 = scmp.ne.s32.totalorder %s39, %s42
      %p48 = scmp.eq.s32.totalorder %s15, 0
      %p49 = por %p47, %p48
      %p50 = scmp.ne.s32.totalorder %s39, %s42
      %p51 = scmp.eq.s32.totalorder %s20, 1
      %p52 = por %p50, %p51
      %p53 = scmp.ne.s32.totalorder %s42, %s43
      %p54 = scmp.eq.s32.totalorder %s20, 0
      %p55 = por %p53, %p54
      %p56 = scmp.ne.s32.totalorder %s42, %s43
      %p57 = scmp.eq.s32.totalorder %s21, 1
      %p58 = por %p56, %p57
      %p60 = scmp.ne.s32.totalorder %s43, %s59
      %p61 = scmp.eq.s32.totalorder %s21, 0
      %p62 = por %p60, %p61
      %s64 = sadd.s32 %s63, 1
      %p67 = scmp.eq.s32.totalorder %s15, 1
      %p68 = scmp.ne.s32.totalorder %s63, %s65
      %p69 = scmp.eq.s32.totalorder %s15, 0
      %p70 = por %p68, %p69
      %p71 = scmp.ne.s32.totalorder %s63, %s65
      %p72 = scmp.eq.s32.totalorder %s20, 1
      %p73 = por %p71, %p72
      %p74 = scmp.ne.s32.totalorder %s65, %s66
      %p75 = scmp.eq.s32.totalorder %s20, 0
      %p76 = por %p74, %p75
      %p77 = scmp.ne.s32.totalorder %s65, %s66
      %p78 = scmp.eq.s32.totalorder %s21, 1
      %p79 = por %p77, %p78
      %p81 = scmp.ne.s32.totalorder %s66, %s80
      %p82 = scmp.eq.s32.totalorder %s21, 0
      %p83 = por %p81, %p82
      %s85 = sadd.s32 %s84, 1
      %p88 = scmp.eq.s32.totalorder %s15, 1
      %p89 = scmp.ne.s32.totalorder %s84, %s86
      %p90 = scmp.eq.s32.totalorder %s15, 0
      %p91 = por %p89, %p90
      %p92 = scmp.ne.s32.totalorder %s84, %s86
      %p93 = scmp.eq.s32.totalorder %s20, 1
      %p94 = por %p92, %p93
      %p95 = scmp.ne.s32.totalorder %s86, %s87
      %p96 = scmp.eq.s32.totalorder %s20, 0
      %p97 = por %p95, %p96
      %p98 = scmp.ne.s32.totalorder %s86, %s87
      %p99 = scmp.eq.s32.totalorder %s21, 1
      %p100 = por %p98, %p99
      %p102 = scmp.ne.s32.totalorder %s87, %s101
      %p103 = scmp.eq.s32.totalorder %s21, 0
      %p104 = por %p102, %p103
      %s105 = ssub.s32 %s22, %s34
      %s106 = ssub.s32 %s23, %s30
      %s107 = sor.u32 %s105, %s106
      %p108 = scmp.eq.s32.totalorder %s107, 0
      %s110 = sadd.s32 %s109, 1
      %s111 = scalar_select %p108, %s109, %s110
      %p114 = pneg %p108
      %p115 = scmp.eq.s32.totalorder %s15, 1
      %p116 = por %p114, %p115
      %p117 = scmp.ne.s32.totalorder %s109, %s112
      %p118 = scmp.eq.s32.totalorder %s15, 0
      %p119 = por %p117, %p118
      %p120 = scmp.ne.s32.totalorder %s109, %s112
      %p121 = scmp.eq.s32.totalorder %s20, 1
      %p122 = por %p120, %p121
      %p123 = scmp.ne.s32.totalorder %s112, %s113
      %p124 = scmp.eq.s32.totalorder %s20, 0
      %p125 = por %p123, %p124
      %p126 = scmp.ne.s32.totalorder %s112, %s113
      %p127 = scmp.eq.s32.totalorder %s21, 1
      %p128 = por %p126, %p127
      %p130 = scmp.ne.s32.totalorder %s113, %s129
      %p131 = scmp.eq.s32.totalorder %s21, 0
      %p132 = por %p130, %p131
      %p133 = scmp.le.s32.totalorder 1, %s15
      %p134 = scmp.lt.s32.totalorder %s15, 3
      %p135 = pnand %p133, %p134
      %p136 = pneg %p135
      // Predicated region
      $region9: #{tpu_custom_call.1} parent=5 // pred_check
        _
      $region10: #{tpu_custom_call.1} parent=5 // pred_check_branch
        %138 = sbr.rel (%p135) target = $region12
      $region11: #{tpu_custom_call.1} parent=5 // pred_region
        %s139 = ssub.s32 %s15, 1
        // Predicated region
        $region13: #{tpu_custom_call.1} parent=11 // pred_check
          %p140 = pneg %p76
        $region14: #{tpu_custom_call.1} parent=11 // pred_check_branch
          %142 = sbr.rel (%p140) target = $region16
        $region15: #{tpu_custom_call.1} parent=11 // pred_region
          _
        $region16: #{tpu_custom_call.1} parent=11 // pred_fallthru
          _
        // Predicated region
        $region17: #{tpu_custom_call.1} parent=11 // pred_check
          %p143 = pneg %p97
        $region18: #{tpu_custom_call.1} parent=11 // pred_check_branch
          %145 = sbr.rel (%p143) target = $region20
        $region19: #{tpu_custom_call.1} parent=11 // pred_region
          _
        $region20: #{tpu_custom_call.1} parent=11 // pred_fallthru
          _
      $region12: #{tpu_custom_call.1} parent=5 // pred_fallthru
        _
      %p146 = scmp.lt.s32.totalorder %s15, 2
      // Predicated region
      $region21: #{tpu_custom_call.1} parent=5 // pred_check
        %p147 = pneg %p146
      $region22: #{tpu_custom_call.1} parent=5 // pred_check_branch
        %149 = sbr.rel (%p147) target = $region24
      $region23: #{tpu_custom_call.1} parent=5 // pred_region
        // Predicated region
        $region25: #{tpu_custom_call.1} parent=23 // pred_check
          %p150 = pneg %p49
        $region26: #{tpu_custom_call.1} parent=23 // pred_check_branch
          %152 = sbr.rel (%p150) target = $region28
        $region27: #{tpu_custom_call.1} parent=23 // pred_region
          %s153 = sand.u32 %s39, 1
          %s154 = scalar_lea.sflag [#allocation3], %s153
          %s155 = sand.u32 %s39, 1
          %s156 = smul.addr %s155, 64
          %s157 = scalar_lea.vmem [#allocation2], %s156
          %s158 = smul.u32 2, %s23
          %s160 = ssub.s32 1024, 1024
          %161 = vsyncadd %s154, %s160
          %s162 = smul.addr %s22, 8
          %s163 = sadd.s32 %s158, %s162
          %s164 = smul.addr %s163, 128
          %s165 = scalar_lea.hbm %s0, %s164
          %s166 = sshll.u32 %s157, 4
          %s167 = int_to_ptr.vmem [resolvable:$true] %s166
          %172 = dma.hbm_to_vmem [thread:$0]  %s165, 1024, %s167, %s154, 256, 256, 16
        $region28: #{tpu_custom_call.1} parent=23 // pred_fallthru
          _
      $region24: #{tpu_custom_call.1} parent=5 // pred_fallthru
        _
      %p173 = scmp.le.s32.totalorder 1, %s15
      %p174 = scmp.lt.s32.totalorder %s15, 3
      %p175 = pnand %p173, %p174
      %p176 = pneg %p175
      // Predicated region
      $region29: #{tpu_custom_call.1} parent=5 // pred_check
        _
      $region30: #{tpu_custom_call.1} parent=5 // pred_check_branch
        %178 = sbr.rel (%p175) target = $region32
      $region31: #{tpu_custom_call.1} parent=5 // pred_region
        %s179 = ssub.s32 %s15, 1
        %s180 = sand.u32 %s42, 1
        %s181 = scalar_lea.sflag [#allocation3], %s180
        %s182 = sand.u32 %s42, 1
        %s183 = smul.addr %s182, 64
        %s184 = scalar_lea.vmem [#allocation2], %s183
        // Predicated region
        $region33: #{tpu_custom_call.1} parent=31 // pred_check
          %p185 = pneg %p55
        $region34: #{tpu_custom_call.1} parent=31 // pred_check_branch
          %187 = sbr.rel (%p185) target = $region36
        $region35: #{tpu_custom_call.1} parent=31 // pred_region
          %188 = dma.done %s181, 1024
        $region36: #{tpu_custom_call.1} parent=31 // pred_fallthru
          _
        %s189 = sand.u32 %s42, 1
        %s190 = scalar_lea.sflag [#allocation3], %s189
        %s191 = sand.u32 %s42, 1
        %s192 = smul.addr %s191, 64
        %s193 = scalar_lea.vmem [#allocation2], %s192
        %p194 = pneg %p55
        %p195 = pneg %p52
        %p196 = pneg %p76
        %p197 = pneg %p73
        %p198 = pneg %p97
        %p199 = pneg %p94
        %p200 = pneg %p125
        %p201 = pneg %p122
        %s202 = sand.u32 %s112, 1
        %s203 = scalar_lea.sflag [#allocation4], %s202
        %s204 = sand.u32 %s112, 1
        %s205 = smul.addr %s204, 64
        %s206 = scalar_lea.vmem [#allocation5], %s205
        %s207 = smul.u32 2, %s25
        %s208 = smul.u32 2, %s25
        %v209 = vld [vmem:[%s1] sm:$0xff]
        %v210 = vld [vmem:[%s2] sm:$0xff]
        %v211 = vld [vmem:[%s2 + $0x8] sm:$0xff]
        %v212 = vld [vmem:[%s2 + $0x10] sm:$0xff]
        %v213 = vld [vmem:[%s2 + $0x18] sm:$0xff]
        %v214 = vld [vmem:[%s184] sm:$0xff]
        %v215 = vld [vmem:[%s184 + $0x8] sm:$0xff]
        %v216 = vld [vmem:[%s184 + $0x10] sm:$0xff]
        %v217 = vld [vmem:[%s184 + $0x18] sm:$0xff]
        %v218 = vld [vmem:[%s184 + $0x20] sm:$0xff]
        %v219 = vld [vmem:[%s184 + $0x28] sm:$0xff]
        %v220 = vld [vmem:[%s184 + $0x30] sm:$0xff]
        %v221 = vld [vmem:[%s184 + $0x38] sm:$0xff]
        %vm222 = vcmask 261120
        %v224 = vsel %vm222, %v209, 0
        %226 = vmatprep.subr.mxu0 0.0
        %227 = vmatpush1.msra.mxu0 0.0
        %228 = vmatprep.subr.mxu0 0.0
        %229 = vmatpush1.msra.mxu0 0.0
        %230 = vmatprep.subr.mxu0 0.0
        %231 = vmatpush1.msra.mxu0 0.0
        %232 = vmatprep.subr.mxu0 0.0
        %233 = vmatpush1.msra.mxu0 0.0
        %234 = vmatprep.subr.mxu0 0.0
        %235 = vmatpush1.msra.mxu0 0.0
        %236 = vmatprep.subr.mxu0 0.0
        %237 = vmatpush1.msra.mxu0 0.0
        %238 = vmatprep.subr.mxu0 0.0
        %239 = vmatpush1.msra.mxu0 0.0
        %240 = vmatprep.subr.mxu0 0.0
        %241 = vmatpush1.msra.mxu0 0.0
        %242 = vmatprep.subr.mxu0 0.0
        %243 = vmatpush1.msra.mxu0 0.0
        %244 = vmatprep.subr.mxu0 0.0
        %245 = vmatpush1.msra.mxu0 0.0
        %246 = vmatprep.subr.mxu0 0.0
        %247 = vmatpush1.msra.mxu0 0.0
        %248 = vmatprep.subr.mxu0 0.0
        %249 = vmatpush1.msra.mxu0 0.0
        %250 = vmatprep.subr.mxu0 %v221
        %251 = vmatpush1.msra.mxu0 %v220
        %252 = vmatprep.subr.mxu0 %v219
        %253 = vmatpush1.msra.mxu0 %v218
        %254 = vmatprep.subr.mxu0 %v217
        %255 = vmatpush1.msra.mxu0 %v216
        %256 = vmatprep.subr.mxu0 %v215
        %257 = vmatpush1.msra.mxu0 %v214
        %258 = vmatprep.subr.mxu0 0.0
        %259 = vmatpush2.msra.mxu0 0.0
        %260 = vmatprep.subr.mxu0 0.0
        %261 = vmatpush2.msra.mxu0 0.0
        %262 = vmatprep.subr.mxu0 0.0
        %263 = vmatpush2.msra.mxu0 0.0
        %264 = vmatprep.subr.mxu0 0.0
        %265 = vmatpush2.msra.mxu0 0.0
        %266 = vmatprep.subr.mxu0 0.0
        %267 = vmatpush2.msra.mxu0 0.0
        %268 = vmatprep.subr.mxu0 0.0
        %269 = vmatpush2.msra.mxu0 0.0
        %270 = vmatprep.subr.mxu0 0.0
        %271 = vmatpush2.msra.mxu0 0.0
        %272 = vmatprep.subr.mxu0 0.0
        %273 = vmatpush2.msra.mxu0 0.0
        %274 = vmatprep.subr.mxu0 0.0
        %275 = vmatpush2.msra.mxu0 0.0
        %276 = vmatprep.subr.mxu0 0.0
        %277 = vmatpush2.msra.mxu0 0.0
        %278 = vmatprep.subr.mxu0 0.0
        %279 = vmatpush2.msra.mxu0 0.0
        %280 = vmatprep.subr.mxu0 0.0
        %281 = vmatpush2.msra.mxu0 0.0
        %282 = vmatprep.subr.mxu0 0.0
        %283 = vmatpush2.msra.mxu0 0.0
        %284 = vmatprep.subr.mxu0 0.0
        %285 = vmatpush2.msra.mxu0 0.0
        %286 = vmatprep.subr.mxu0 0.0
        %287 = vmatpush2.msra.mxu0 0.0
        %288 = vmatprep.subr.mxu0 0.0
        %289 = vmatpush2.msra.mxu0 0.0
        %290 = vmatprep.mubr.f32.mxu0 0.0
        %291 = vmatmul.mubr.f32.gmra.mxu0 %v224
        %v292 = vpop.f32.mrf.mxu0
        %v293 = vadd.f32 0.0, %v292
        %v294 = vpop.f32.mrf.mxu0
        %v295 = vadd.f32 0.0, %v294
        %296 = vdwg.mxu0
        %v297 = vmax.f32 %v293, 0.0
        %v298 = vmax.f32 %v295, 0.0
        %vm299 = vcmask 64512
        %v301 = vsel %vm299, %v210, 0
        %v304 = vsel %vm299, %v211, 0
        %v307 = vsel %vm299, %v212, 0
        %v310 = vsel %vm299, %v213, 0
        %312 = vmatprep.subr.mxu0 0.0
        %313 = vmatpush1.msra.mxu0 0.0
        %314 = vmatprep.subr.mxu0 0.0
        %315 = vmatpush1.msra.mxu0 0.0
        %316 = vmatprep.subr.mxu0 0.0
        %317 = vmatpush1.msra.mxu0 0.0
        %318 = vmatprep.subr.mxu0 0.0
        %319 = vmatpush1.msra.mxu0 0.0
        %320 = vmatprep.subr.mxu0 0.0
        %321 = vmatpush1.msra.mxu0 0.0
        %322 = vmatprep.subr.mxu0 0.0
        %323 = vmatpush1.msra.mxu0 0.0
        %324 = vmatprep.subr.mxu0 0.0
        %325 = vmatpush1.msra.mxu0 0.0
        %326 = vmatprep.subr.mxu0 0.0
        %327 = vmatpush1.msra.mxu0 0.0
        %328 = vmatprep.subr.mxu0 0.0
        %329 = vmatpush1.msra.mxu0 0.0
        %330 = vmatprep.subr.mxu0 0.0
        %331 = vmatpush1.msra.mxu0 0.0
        %332 = vmatprep.subr.mxu0 0.0
        %333 = vmatpush1.msra.mxu0 0.0
        %334 = vmatprep.subr.mxu0 0.0
        %335 = vmatpush1.msra.mxu0 0.0
        %336 = vmatprep.subr.mxu0 0.0
        %337 = vmatpush1.msra.mxu0 0.0
        %338 = vmatprep.subr.mxu0 0.0
        %339 = vmatpush1.msra.mxu0 0.0
        %340 = vmatprep.subr.mxu0 0.0
        %341 = vmatpush1.msra.mxu0 0.0
        %342 = vmatprep.subr.mxu0 %v298
        %343 = vmatpush1.msra.mxu0 %v297
        %344 = vmatprep.subr.mxu0 0.0
        %345 = vmatpush2.msra.mxu0 0.0
        %346 = vmatprep.subr.mxu0 0.0
        %347 = vmatpush2.msra.mxu0 0.0
        %348 = vmatprep.subr.mxu0 0.0
        %349 = vmatpush2.msra.mxu0 0.0
        %350 = vmatprep.subr.mxu0 0.0
        %351 = vmatpush2.msra.mxu0 0.0
        %352 = vmatprep.subr.mxu0 0.0
        %353 = vmatpush2.msra.mxu0 0.0
        %354 = vmatprep.subr.mxu0 0.0
        %355 = vmatpush2.msra.mxu0 0.0
        %356 = vmatprep.subr.mxu0 0.0
        %357 = vmatpush2.msra.mxu0 0.0
        %358 = vmatprep.subr.mxu0 0.0
        %359 = vmatpush2.msra.mxu0 0.0
        %360 = vmatprep.subr.mxu0 0.0
        %361 = vmatpush2.msra.mxu0 0.0
        %362 = vmatprep.subr.mxu0 0.0
        %363 = vmatpush2.msra.mxu0 0.0
        %364 = vmatprep.subr.mxu0 0.0
        %365 = vmatpush2.msra.mxu0 0.0
        %366 = vmatprep.subr.mxu0 0.0
        %367 = vmatpush2.msra.mxu0 0.0
        %368 = vmatprep.subr.mxu0 0.0
        %369 = vmatpush2.msra.mxu0 0.0
        %370 = vmatprep.subr.mxu0 0.0
        %371 = vmatpush2.msra.mxu0 0.0
        %372 = vmatprep.subr.mxu0 0.0
        %373 = vmatpush2.msra.mxu0 0.0
        %374 = vmatprep.subr.mxu0 0.0
        %375 = vmatpush2.msra.mxu0 0.0
        %376 = vmatprep.mubr.f32.mxu0 0.0
        %377 = vmatmul.mubr.f32.gmra.mxu0 %v301
        %v378 = vpop.f32.mrf.mxu0
        %v379 = vadd.f32 0.0, %v378
        %v380 = vpop.f32.mrf.mxu0
        %v381 = vadd.f32 0.0, %v380
        %382 = vmatprep.mubr.f32.mxu0 0.0
        %383 = vmatmul.mubr.f32.gmra.mxu0 %v304
        %v384 = vpop.f32.mrf.mxu0
        %v385 = vadd.f32 0.0, %v384
        %v386 = vpop.f32.mrf.mxu0
        %v387 = vadd.f32 0.0, %v386
        %388 = vmatprep.mubr.f32.mxu0 0.0
        %389 = vmatmul.mubr.f32.gmra.mxu0 %v307
        %v390 = vpop.f32.mrf.mxu0
        %v391 = vadd.f32 0.0, %v390
        %v392 = vpop.f32.mrf.mxu0
        %v393 = vadd.f32 0.0, %v392
        %394 = vmatprep.mubr.f32.mxu0 0.0
        %395 = vmatmul.mubr.f32.gmra.mxu0 %v310
        %v396 = vpop.f32.mrf.mxu0
        %v397 = vadd.f32 0.0, %v396
        %v398 = vpop.f32.mrf.mxu0
        %v399 = vadd.f32 0.0, %v398
        %400 = vdwg.mxu0
        %401 = vst [vmem:[%s206] sm:$0xff] %v379
        %402 = vst [vmem:[%s206 + $0x8] sm:$0xff] %v381
        %403 = vst [vmem:[%s206 + $0x10] sm:$0xff] %v385
        %404 = vst [vmem:[%s206 + $0x18] sm:$0xff] %v387
        %405 = vst [vmem:[%s206 + $0x20] sm:$0xff] %v391
        %406 = vst [vmem:[%s206 + $0x28] sm:$0xff] %v393
        %407 = vst [vmem:[%s206 + $0x30] sm:$0xff] %v397
        %408 = vst [vmem:[%s206 + $0x38] sm:$0xff] %v399
        %s409 = sand.u32 %s112, 1
        %s410 = scalar_lea.sflag [#allocation4], %s409
        %s411 = sand.u32 %s112, 1
        %s412 = smul.addr %s411, 64
        %s413 = scalar_lea.vmem [#allocation5], %s412
        // Predicated region
        $region37: #{tpu_custom_call.1} parent=31 // pred_check
          %p414 = pneg %p122
        $region38: #{tpu_custom_call.1} parent=31 // pred_check_branch
          %416 = sbr.rel (%p414) target = $region40
        $region39: #{tpu_custom_call.1} parent=31 // pred_region
          %s417 = smul.u32 2, %s25
          %s419 = ssub.s32 1024, 1024
          %420 = vsyncadd %s410, %s419
          %s421 = smul.addr %s24, 8
          %s422 = sadd.s32 %s417, %s421
          %s423 = smul.addr %s422, 128
          %s424 = scalar_lea.hbm %s3, %s423
          %s425 = sshll.u32 %s413, 4
          %s426 = int_to_ptr.vmem [resolvable:$true] %s425
          %431 = dma.vmem_to_hbm [thread:$0]  %s426, 1024, %s424, %s410, 256, 256, 16
        $region40: #{tpu_custom_call.1} parent=31 // pred_fallthru
          _
      $region32: #{tpu_custom_call.1} parent=5 // pred_fallthru
        _
      %p432 = scmp.le.s32.totalorder 2, %s15
      // Predicated region
      $region41: #{tpu_custom_call.1} parent=5 // pred_check
        %p433 = pneg %p432
      $region42: #{tpu_custom_call.1} parent=5 // pred_check_branch
        %435 = sbr.rel (%p433) target = $region44
      $region43: #{tpu_custom_call.1} parent=5 // pred_region
        %s436 = ssub.s32 %s15, 2
        // Predicated region
        $region45: #{tpu_custom_call.1} parent=43 // pred_check
          %p437 = pneg %p128
        $region46: #{tpu_custom_call.1} parent=43 // pred_check_branch
          %439 = sbr.rel (%p437) target = $region48
        $region47: #{tpu_custom_call.1} parent=43 // pred_region
          %s440 = sand.u32 %s113, 1
          %s441 = scalar_lea.sflag [#allocation4], %s440
          %s442 = sand.u32 %s113, 1
          %s443 = smul.addr %s442, 64
          %s444 = scalar_lea.vmem [#allocation5], %s443
          %445 = dma.done %s441, 1024
        $region48: #{tpu_custom_call.1} parent=43 // pred_fallthru
          _
      $region44: #{tpu_custom_call.1} parent=5 // pred_fallthru
        _
    $region6: #{tpu_custom_call.1} parent=1 // loop_footer
      %s19 = sadd.s32 1, %s15
    $region7: #{tpu_custom_call.1} parent=1 // loop_footer_branch
      %14 = sbr.rel target = $region3
    $region8: #{tpu_custom_call.1} parent=1 // loop_exit
      _
    %446 = vsyncpa [#allocation3], 1
    %s447 = scalar_lea.sflag [#allocation3], 1
    %448 = vsyncpa %s447, 1
    %449 = vsyncpa [#allocation4], 1
    %s450 = scalar_lea.sflag [#allocation4], 1
    %451 = vsyncpa %s450, 1

</llo_original>
